<compile_context>
chip_gen: v7x
topology: tpu7x:2x2x1
jax: 0.10.0
libtpu: 0.0.40
codegen_flags: <defaults>
</compile_context>

<pallas_src>
import functools
import math

import jax
import jax.numpy as jnp
from jax.experimental import pallas as pl
from jax.experimental.pallas import tpu as pltpu


def _round_up(x, m):
    return (x + m - 1) // m * m


# --------------------------------------------------------------------------
# Pallas kernel: fused mask + pos-add + LayerNorm + SpatialNorm modulation
# --------------------------------------------------------------------------
def _movq_kernel(x_ref, pos_ref, zq_ref, wy_ref, wb_ref, vec_ref, o_ref, *, eps):
    """One (batch b, token-tile t) grid step.

    x_ref  : (tn, C) raw decoder input block
    pos_ref: (tn, C) alpha-scaled sinusoidal positional embeddings
    zq_ref : (tn, C) cond (zq), nearest-interpolated to the decoder length
    wy_ref : (C, C)  conv_y 1x1 weight, laid out (C_in, C_out)
    wb_ref : (C, C)  conv_b 1x1 weight, laid out (C_in, C_out)
    vec_ref: (4, C)  rows = [ln_gamma, ln_beta, conv_y bias, conv_b bias]
    o_ref  : (tn, C) output block
    """
    x = x_ref[...].astype(jnp.float32)
    pos = pos_ref[...].astype(jnp.float32)
    zq = zq_ref[...].astype(jnp.float32)
    vec = vec_ref[...].astype(jnp.float32)
    gamma, beta = vec[0:1, :], vec[1:2, :]
    b_y, b_b = vec[2:3, :], vec[3:4, :]

    # padding_mask = x.abs().sum(-1).eq(0) on the raw input (pre pos-embed).
    nonpad = (jnp.sum(jnp.abs(x), axis=-1, keepdims=True) != 0.0)
    nonpad = nonpad.astype(jnp.float32)                       # (tn, 1)

    # x = (x + alpha * positions); dropout is identity at inference; mask.
    h = (x + pos) * nonpad

    # TODO(synk): TransformerEncoderLayer stack goes here (not in spec).

    # SpatialNorm: LayerNorm(f) * conv_y(zq) + conv_b(zq)
    mu = jnp.mean(h, axis=-1, keepdims=True)
    var = jnp.mean(jnp.square(h - mu), axis=-1, keepdims=True)
    ln = (h - mu) * jax.lax.rsqrt(var + eps)
    ln = ln * gamma + beta

    scale = jnp.dot(zq, wy_ref[...], preferred_element_type=jnp.float32) + b_y
    shift = jnp.dot(zq, wb_ref[...], preferred_element_type=jnp.float32) + b_b

    o_ref[...] = ((ln * scale + shift) * nonpad).astype(o_ref.dtype)


# --------------------------------------------------------------------------
# Wrapper-side (cheap, gather-heavy) pieces
# --------------------------------------------------------------------------
def _sinusoidal_positions(x, alpha, padding_idx=0):
    """fairseq-style sinusoidal positional embeddings of x[..., 0]."""
    B, T, C = x.shape
    mask = (x[..., 0] != float(padding_idx)).astype(jnp.int32)
    positions = jnp.cumsum(mask, axis=1) * mask + padding_idx        # (B, T)

    half = C // 2
    freq = jnp.exp(jnp.arange(half, dtype=jnp.float32)
                   * (-math.log(10000.0) / max(half - 1, 1)))
    tab_pos = jnp.arange(T + padding_idx + 1, dtype=jnp.float32)
    ang = tab_pos[:, None] * freq[None, :]
    table = jnp.concatenate([jnp.sin(ang), jnp.cos(ang)], axis=1)
    if C % 2 == 1:
        table = jnp.concatenate(
            [table, jnp.zeros((table.shape[0], 1), table.dtype)], axis=1)
    table = table.at[padding_idx].set(0.0)
    table = table * jnp.asarray(alpha, jnp.float32)
    return jnp.take(table, positions, axis=0)                        # (B, T, C)


def _interp_nearest(cond, T):
    """F.interpolate(cond.transpose, size=T, mode='nearest') along time."""
    B, Tc, C = cond.shape
    idx = jnp.floor(jnp.arange(T) * (Tc / T)).astype(jnp.int32)
    idx = jnp.clip(idx, 0, Tc - 1)
    return jnp.take(cond, idx, axis=1)                               # (B, T, C)


# --------------------------------------------------------------------------
# Public entry point
# --------------------------------------------------------------------------
def movq_decoder_forward(x, cond, params, *, tn=256, ln_eps=1e-5):
    """x: (B, T, C) decoder input, cond: (B, T_cond, C) zq condition.

    params:
      pos_embed_alpha : scalar
      ln_gamma, ln_beta, conv_y_b, conv_b_b : (C,)
      conv_y_w, conv_b_w : (C_in, C_out)  (torch Conv1d weight[:, :, 0].T)
    Returns (B, T, C) in x.dtype.
    """
    B, T, C = x.shape
    assert cond.shape[0] == B and cond.shape[2] == C

    pos = _sinusoidal_positions(x, params["pos_embed_alpha"]).astype(x.dtype)
    zq = _interp_nearest(cond, T).astype(x.dtype)

    # token tile: multiple of 8 sublanes, clamped for short sequences
    tn = max(8, min(int(tn), _round_up(T, 8)))
    tn = _round_up(tn, 8)
    T_pad = _round_up(T, tn)
    if T_pad != T:
        padw = ((0, 0), (0, T_pad - T), (0, 0))
        x_p = jnp.pad(x, padw)
        pos_p = jnp.pad(pos, padw)
        zq_p = jnp.pad(zq, padw)
    else:
        x_p, pos_p, zq_p = x, pos, zq

    wy = params["conv_y_w"].astype(jnp.float32)                      # (C, C)
    wb = params["conv_b_w"].astype(jnp.float32)                      # (C, C)
    vec = jnp.stack([params["ln_gamma"], params["ln_beta"],
                     params["conv_y_b"], params["conv_b_b"]],
                    axis=0).astype(jnp.float32)                      # (4, C)

    # VMEM budget (double-buffered token blocks + resident weights)
    isz = jnp.dtype(x.dtype).itemsize
    blk = tn * C * isz
    est = 2 * 3 * blk + 2 * C * C * 4 + 4 * C * 4 + 2 * blk
    vmem_limit = int(min(max(2 * est, 8 << 20), 64 << 20))

    kernel = functools.partial(_movq_kernel, eps=ln_eps)

    out = pl.pallas_call(
        kernel,
        out_shape=jax.ShapeDtypeStruct((B, T_pad, C), x.dtype),
        grid_spec=pltpu.PrefetchScalarGridSpec(
            num_scalar_prefetch=0,
            grid=(B, T_pad // tn),
            in_specs=[
                pl.BlockSpec((None, tn, C), lambda b, t: (b, t, 0)),  # x
                pl.BlockSpec((None, tn, C), lambda b, t: (b, t, 0)),  # pos
                pl.BlockSpec((None, tn, C), lambda b, t: (b, t, 0)),  # zq
                pl.BlockSpec((C, C), lambda b, t: (0, 0)),            # conv_y W
                pl.BlockSpec((C, C), lambda b, t: (0, 0)),            # conv_b W
                pl.BlockSpec((4, C), lambda b, t: (0, 0)),            # vec params
            ],
            out_specs=pl.BlockSpec((None, tn, C), lambda b, t: (b, t, 0)),
        ),
        compiler_params=pltpu.CompilerParams(
            dimension_semantics=("parallel", "parallel"),
            vmem_limit_bytes=vmem_limit,
        ),
    )(x_p, pos_p, zq_p, wy, wb, vec)

    return out[:, :T, :]


# --------------------------------------------------------------------------
# float64 numpy reference (independent of the jnp wrapper helpers)
# --------------------------------------------------------------------------
def _reference_np(x, cond, params, ln_eps=1e-5):
    import numpy as np
    x = np.asarray(x, np.float64)
    cond = np.asarray(cond, np.float64)
    B, T, C = x.shape
    alpha = float(params["pos_embed_alpha"])

    mask = (x[..., 0] != 0.0).astype(np.int64)
    positions = np.cumsum(mask, axis=1) * mask
    half = C // 2
    freq = np.exp(np.arange(half) * (-math.log(10000.0) / max(half - 1, 1)))
    ang = np.arange(T + 1)[:, None] * freq[None, :]
    table = np.concatenate([np.sin(ang), np.cos(ang)], axis=1)
    if C % 2 == 1:
        table = np.concatenate([table, np.zeros((table.shape[0], 1))], axis=1)
    table[0] = 0.0
    pos = alpha * table[positions]

    nonpad = (np.abs(x).sum(-1) != 0.0).astype(np.float64)[..., None]
    h = (x + pos) * nonpad

    Tc = cond.shape[1]
    idx = np.clip(np.floor(np.arange(T) * (Tc / T)).astype(np.int64), 0, Tc - 1)
    zq = cond[:, idx, :]

    mu = h.mean(-1, keepdims=True)
    var = ((h - mu) ** 2).mean(-1, keepdims=True)
    ln = (h - mu) / np.sqrt(var + ln_eps)
    ln = ln * np.asarray(params["ln_gamma"], np.float64) \
        + np.asarray(params["ln_beta"], np.float64)
    scale = zq @ np.asarray(params["conv_y_w"], np.float64) \
        + np.asarray(params["conv_y_b"], np.float64)
    shift = zq @ np.asarray(params["conv_b_w"], np.float64) \
        + np.asarray(params["conv_b_b"], np.float64)
    return (ln * scale + shift) * nonpad


if __name__ == "__main__":
    import numpy as np

    # Small shapes consistent with the module: batch=2, seq=16, hidden=32.
    B, T, C = 2, 16, 32
    T_cond = 8

    key = jax.random.PRNGKey(0)
    ks = jax.random.split(key, 8)

    x = jax.random.normal(ks[0], (B, T, C), dtype=jnp.float32)
    # make the last 4 frames of batch 1 all-zero -> exercised padding path
    x = x.at[1, T - 4:, :].set(0.0)
    cond = jax.random.normal(ks[1], (B, T_cond, C), dtype=jnp.float32)

    params = dict(
        pos_embed_alpha=jnp.float32(1.0),
        ln_gamma=(jnp.ones((C,), jnp.float32)
                  + 0.1 * jax.random.normal(ks[2], (C,), dtype=jnp.float32)),
        ln_beta=0.1 * jax.random.normal(ks[3], (C,), dtype=jnp.float32),
        conv_y_w=(jax.random.normal(ks[4], (C, C), dtype=jnp.float32)
                  / math.sqrt(C)),
        conv_y_b=0.1 * jax.random.normal(ks[5], (C,), dtype=jnp.float32),
        conv_b_w=(jax.random.normal(ks[6], (C, C), dtype=jnp.float32)
                  / math.sqrt(C)),
        conv_b_b=0.1 * jax.random.normal(ks[7], (C,), dtype=jnp.float32),
    )

    out = movq_decoder_forward(x, cond, params)
    jax.block_until_ready(out)

    assert out.shape == (B, T, C)
    assert out.dtype == x.dtype

    ref = _reference_np(x, cond, params)
    np.testing.assert_allclose(np.asarray(out, np.float64), ref,
                               atol=3e-3, rtol=3e-3)
    # padded frames must be exactly zeroed by the nonpadding mask
    assert np.all(np.asarray(out)[1, T - 4:, :] == 0.0)

    print("KERNEL_OK")
</pallas_src>

<mosaic_0001>
module attributes {stable_mosaic.version = 11 : i64} {
  func.func @_movq_kernel(%arg0: i32, %arg1: i32, %arg2: memref<1x16x32xf32, #tpu.memory_space<vmem>>, %arg3: memref<1x16x32xf32, #tpu.memory_space<vmem>>, %arg4: memref<1x16x32xf32, #tpu.memory_space<vmem>>, %arg5: memref<32x32xf32, #tpu.memory_space<vmem>>, %arg6: memref<32x32xf32, #tpu.memory_space<vmem>>, %arg7: memref<4x32xf32, #tpu.memory_space<vmem>>, %arg8: memref<1x16x32xf32, #tpu.memory_space<vmem>>) attributes {dimension_semantics = [#tpu.dimension_semantics<parallel>, #tpu.dimension_semantics<parallel>], iteration_bounds = array<i64: 2, 1>, scalar_prefetch = 0 : i64, scratch_operands = 0 : i64, tpu.core_type = #tpu.core_type<tc>, window_params = [{transform_indices = @transform_0, window_bounds = array<i64: 1, 16, 32>}, {transform_indices = @transform_1, window_bounds = array<i64: 1, 16, 32>}, {transform_indices = @transform_2, window_bounds = array<i64: 1, 16, 32>}, {pipeline_mode = #tpu.pipeline_mode<synchronous>, transform_indices = @transform_3, window_bounds = array<i64: 32, 32>}, {pipeline_mode = #tpu.pipeline_mode<synchronous>, transform_indices = @transform_4, window_bounds = array<i64: 32, 32>}, {pipeline_mode = #tpu.pipeline_mode<synchronous>, transform_indices = @transform_5, window_bounds = array<i64: 4, 32>}, {transform_indices = @transform_6, window_bounds = array<i64: 1, 16, 32>}]} {
    %c0 = arith.constant 0 : index
    %c0_0 = arith.constant 0 : index
    %c0_1 = arith.constant 0 : index
    %0 = vector.load %arg2[%c0, %c0_0, %c0_1] : memref<1x16x32xf32, #tpu.memory_space<vmem>>, vector<1x16x32xf32>
    %1 = vector.shape_cast %0 : vector<1x16x32xf32> to vector<16x32xf32>
    %c0_2 = arith.constant 0 : index
    %c0_3 = arith.constant 0 : index
    %c0_4 = arith.constant 0 : index
    %2 = vector.load %arg3[%c0_2, %c0_3, %c0_4] : memref<1x16x32xf32, #tpu.memory_space<vmem>>, vector<1x16x32xf32>
    %3 = vector.shape_cast %2 : vector<1x16x32xf32> to vector<16x32xf32>
    %c0_5 = arith.constant 0 : index
    %c0_6 = arith.constant 0 : index
    %c0_7 = arith.constant 0 : index
    %4 = vector.load %arg4[%c0_5, %c0_6, %c0_7] : memref<1x16x32xf32, #tpu.memory_space<vmem>>, vector<1x16x32xf32>
    %5 = vector.shape_cast %4 : vector<1x16x32xf32> to vector<16x32xf32>
    %c0_8 = arith.constant 0 : index
    %c0_9 = arith.constant 0 : index
    %6 = vector.load %arg7[%c0_8, %c0_9] : memref<4x32xf32, #tpu.memory_space<vmem>>, vector<4x32xf32>
    %7 = vector.extract_strided_slice %6 {offsets = [0, 0], sizes = [1, 32], strides = [1, 1]} : vector<4x32xf32> to vector<1x32xf32>
    %8 = vector.extract_strided_slice %6 {offsets = [1, 0], sizes = [1, 32], strides = [1, 1]} : vector<4x32xf32> to vector<1x32xf32>
    %9 = vector.extract_strided_slice %6 {offsets = [2, 0], sizes = [1, 32], strides = [1, 1]} : vector<4x32xf32> to vector<1x32xf32>
    %10 = vector.extract_strided_slice %6 {offsets = [3, 0], sizes = [1, 32], strides = [1, 1]} : vector<4x32xf32> to vector<1x32xf32>
    %11 = math.absf %1 : vector<16x32xf32>
    %cst = arith.constant dense<0.000000e+00> : vector<16xf32>
    %12 = vector.multi_reduction <add>, %11, %cst [1] : vector<16x32xf32> to vector<16xf32>
    %13 = vector.shape_cast %12 : vector<16xf32> to vector<16x1xf32>
    %cst_10 = arith.constant 0.000000e+00 : f32
    %14 = vector.broadcast %cst_10 : f32 to vector<16x1xf32>
    %15 = arith.cmpf one, %13, %14 : vector<16x1xf32>
    %16 = arith.extui %15 : vector<16x1xi1> to vector<16x1xi32>
    %17 = arith.sitofp %16 : vector<16x1xi32> to vector<16x1xf32>
    %18 = arith.addf %1, %3 : vector<16x32xf32>
    %19 = vector.broadcast %17 : vector<16x1xf32> to vector<16x32xf32>
    %20 = arith.mulf %18, %19 : vector<16x32xf32>
    %cst_11 = arith.constant dense<0.000000e+00> : vector<16xf32>
    %21 = vector.multi_reduction <add>, %20, %cst_11 [1] : vector<16x32xf32> to vector<16xf32>
    %22 = vector.shape_cast %21 : vector<16xf32> to vector<16x1xf32>
    %cst_12 = arith.constant 3.200000e+01 : f32
    %23 = vector.broadcast %cst_12 : f32 to vector<16x1xf32>
    %24 = arith.divf %22, %23 : vector<16x1xf32>
    %25 = vector.broadcast %24 : vector<16x1xf32> to vector<16x32xf32>
    %26 = arith.subf %20, %25 : vector<16x32xf32>
    %27 = arith.mulf %26, %26 : vector<16x32xf32>
    %cst_13 = arith.constant dense<0.000000e+00> : vector<16xf32>
    %28 = vector.multi_reduction <add>, %27, %cst_13 [1] : vector<16x32xf32> to vector<16xf32>
    %29 = vector.shape_cast %28 : vector<16xf32> to vector<16x1xf32>
    %cst_14 = arith.constant 3.200000e+01 : f32
    %30 = vector.broadcast %cst_14 : f32 to vector<16x1xf32>
    %31 = arith.divf %29, %30 : vector<16x1xf32>
    %32 = vector.broadcast %24 : vector<16x1xf32> to vector<16x32xf32>
    %33 = arith.subf %20, %32 : vector<16x32xf32>
    %cst_15 = arith.constant 9.99999974E-6 : f32
    %34 = vector.broadcast %cst_15 : f32 to vector<16x1xf32>
    %35 = arith.addf %31, %34 : vector<16x1xf32>
    %36 = math.rsqrt %35 : vector<16x1xf32>
    %37 = vector.broadcast %36 : vector<16x1xf32> to vector<16x32xf32>
    %38 = arith.mulf %33, %37 : vector<16x32xf32>
    %39 = vector.broadcast %7 : vector<1x32xf32> to vector<16x32xf32>
    %40 = arith.mulf %38, %39 : vector<16x32xf32>
    %41 = vector.broadcast %8 : vector<1x32xf32> to vector<16x32xf32>
    %42 = arith.addf %40, %41 : vector<16x32xf32>
    %c0_16 = arith.constant 0 : index
    %c0_17 = arith.constant 0 : index
    %43 = vector.load %arg5[%c0_16, %c0_17] : memref<32x32xf32, #tpu.memory_space<vmem>>, vector<32x32xf32>
    %cst_18 = arith.constant dense<0.000000e+00> : vector<16x32xf32>
    %44 = tpu.matmul %5, %43, %cst_18 {dimension_numbers = #tpu.dot_dimension_numbers<[1], [0], [0], [1], [0, 0, 1, 1], [], []>} : vector<16x32xf32>, vector<32x32xf32>, vector<16x32xf32> -> vector<16x32xf32>
    %45 = vector.broadcast %9 : vector<1x32xf32> to vector<16x32xf32>
    %46 = arith.addf %44, %45 : vector<16x32xf32>
    %c0_19 = arith.constant 0 : index
    %c0_20 = arith.constant 0 : index
    %47 = vector.load %arg6[%c0_19, %c0_20] : memref<32x32xf32, #tpu.memory_space<vmem>>, vector<32x32xf32>
    %cst_21 = arith.constant dense<0.000000e+00> : vector<16x32xf32>
    %48 = tpu.matmul %5, %47, %cst_21 {dimension_numbers = #tpu.dot_dimension_numbers<[1], [0], [0], [1], [0, 0, 1, 1], [], []>} : vector<16x32xf32>, vector<32x32xf32>, vector<16x32xf32> -> vector<16x32xf32>
    %49 = vector.broadcast %10 : vector<1x32xf32> to vector<16x32xf32>
    %50 = arith.addf %48, %49 : vector<16x32xf32>
    %51 = arith.mulf %42, %46 : vector<16x32xf32>
    %52 = arith.addf %51, %50 : vector<16x32xf32>
    %53 = vector.broadcast %17 : vector<16x1xf32> to vector<16x32xf32>
    %54 = arith.mulf %52, %53 : vector<16x32xf32>
    %c0_22 = arith.constant 0 : index
    %c0_23 = arith.constant 0 : index
    %c0_24 = arith.constant 0 : index
    %55 = vector.load %arg8[%c0_22, %c0_23, %c0_24] : memref<1x16x32xf32, #tpu.memory_space<vmem>>, vector<1x16x32xf32>
    %56 = vector.shape_cast %55 : vector<1x16x32xf32> to vector<16x32xf32>
    %57 = vector.shape_cast %54 : vector<16x32xf32> to vector<1x16x32xf32>
    tpu.vector_store %arg8[%c0_22, %c0_23, %c0_24], %57 {strides = array<i32>} : memref<1x16x32xf32, #tpu.memory_space<vmem>>, vector<1x16x32xf32>,
    return
  }
  func.func @transform_0(%arg0: i32, %arg1: i32) -> (i32, i32, i32) {
    %c0_i32 = arith.constant 0 : i32
    %c0_i32_0 = arith.constant 0 : i32
    return %arg0, %arg1, %c0_i32 : i32, i32, i32
  }
  func.func @transform_1(%arg0: i32, %arg1: i32) -> (i32, i32, i32) {
    %c0_i32 = arith.constant 0 : i32
    %c0_i32_0 = arith.constant 0 : i32
    return %arg0, %arg1, %c0_i32 : i32, i32, i32
  }
  func.func @transform_2(%arg0: i32, %arg1: i32) -> (i32, i32, i32) {
    %c0_i32 = arith.constant 0 : i32
    %c0_i32_0 = arith.constant 0 : i32
    return %arg0, %arg1, %c0_i32 : i32, i32, i32
  }
  func.func @transform_3(%arg0: i32, %arg1: i32) -> (i32, i32) {
    %c0_i32 = arith.constant 0 : i32
    %c0_i32_0 = arith.constant 0 : i32
    %c0_i32_1 = arith.constant 0 : i32
    return %c0_i32, %c0_i32_0 : i32, i32
  }
  func.func @transform_4(%arg0: i32, %arg1: i32) -> (i32, i32) {
    %c0_i32 = arith.constant 0 : i32
    %c0_i32_0 = arith.constant 0 : i32
    %c0_i32_1 = arith.constant 0 : i32
    return %c0_i32, %c0_i32_0 : i32, i32
  }
  func.func @transform_5(%arg0: i32, %arg1: i32) -> (i32, i32) {
    %c0_i32 = arith.constant 0 : i32
    %c0_i32_0 = arith.constant 0 : i32
    %c0_i32_1 = arith.constant 0 : i32
    return %c0_i32, %c0_i32_0 : i32, i32
  }
  func.func @transform_6(%arg0: i32, %arg1: i32) -> (i32, i32, i32) {
    %c0_i32 = arith.constant 0 : i32
    %c0_i32_0 = arith.constant 0 : i32
    return %arg0, %arg1, %c0_i32 : i32, i32, i32
  }
}

</mosaic_0001>

<llo_original>
// kernel: tpu_custom_call.1
$region0: #{tpu_custom_call.1}
  #allocation0 [shape = 'u32[]', space=smem, size = 0x4, offset = 0x4, fixed_abs, tag = 'smem constant byte address 0x4 - core index']
  #allocation1 [shape = 'u32[144,128]{1,0:T(1,128)}', space=vmem, size = 0x12000, scoped, tag = 'internal scratch']
  %s0 = inlined_call_operand.hbm [shape: f32[2,16,32], index: 0, kind: input, shape index: {}]
  %s1 = inlined_call_operand.hbm [shape: f32[2,16,32], index: 1, kind: input, shape index: {}]
  %s2 = inlined_call_operand.hbm [shape: f32[2,16,32], index: 2, kind: input, shape index: {}]
  %s3 = inlined_call_operand.hbm [shape: f32[32,32], index: 3, kind: input, shape index: {}]
  %s4 = inlined_call_operand.hbm [shape: f32[32,32], index: 4, kind: input, shape index: {}]
  %s5 = inlined_call_operand.vmem [shape: f32[4,32], index: 5, kind: input, shape index: {}]
  %s6 = inlined_call_operand.hbm [shape: f32[2,16,32], index: 6, kind: output, shape index: {}]
  %s7 = sld [smem:[#allocation0]]
  $region77: #{tpu_custom_call.1} parent=0
    _
  %s9 = ssub.s32 1, %s7
  %s10 = scalar_select 0, %s9, %s7
  $region1: #{tpu_custom_call.1} parent=0
    #allocation2 [shape = 'u8[16384]{0}', space=vmem, size = 0x4000, scoped, tag = 'input window, operand 0']
    #allocation3 [shape = 's32[2]{0}', space=sflag, size = 0x8, scoped, tag = 'scoped memory for tpu_custom_call.1']
    #allocation4 [shape = 's32[2]{0}', space=sflag, size = 0x8, scoped, tag = 'scoped memory for tpu_custom_call.1']
    #allocation5 [shape = 'u8[16384]{0}', space=vmem, size = 0x4000, scoped, tag = 'input window, operand 1']
    #allocation6 [shape = 's32[2]{0}', space=sflag, size = 0x8, scoped, tag = 'scoped memory for tpu_custom_call.1']
    #allocation7 [shape = 'u8[16384]{0}', space=vmem, size = 0x4000, scoped, tag = 'input window, operand 2']
    #allocation8 [shape = 'u8[16384]{0}', space=vmem, size = 0x4000, scoped, tag = 'input window, operand 3, single buffered']
    #allocation9 [shape = 's32[1]{0}', space=sflag, size = 0x4, scoped, tag = 'scoped memory for tpu_custom_call.1']
    #allocation10 [shape = 'u8[16384]{0}', space=vmem, size = 0x4000, scoped, tag = 'input window, operand 4, single buffered']
    #allocation11 [shape = 'u8[16384]{0}', space=vmem, size = 0x4000, scoped, tag = 'output window, operand 0']
    %11 = vsyncpa [#allocation3], 0
    %s12 = scalar_lea.sflag [#allocation3], 1
    %13 = vsyncpa %s12, 0
    %14 = vsyncpa [#allocation6], 0
    %s15 = scalar_lea.sflag [#allocation6], 1
    %16 = vsyncpa %s15, 0
    %17 = vsyncpa [#allocation9], 0
    %18 = vsyncpa [#allocation4], 0
    %s19 = scalar_lea.sflag [#allocation4], 1
    %20 = vsyncpa %s19, 0
    loop: start=0, step=1, limit=4
    $region2: #{tpu_custom_call.1} parent=1 // loop_pre_header
      _
    $region3: #{tpu_custom_call.1} parent=1 // loop_header
      %s22 = sphi 0, %s26
      %p23 = scmp.ge.s32.totalorder %s22, 4
      %s29 = sphi 0, %s41
      %s30 = sphi 0, %s37
      %s31 = sphi 0, %s29
      %s32 = sphi 0, %s30
      %s33 = sphi 0, %s31
      %s34 = sphi 0, %s32
      %s46 = sphi 0, %s48
      %s49 = sphi 0, %s46
      %s50 = sphi 0, %s49
      %s66 = sphi 0, %s50
      %s74 = sphi 0, %s76
      %s77 = sphi 0, %s74
      %s78 = sphi 0, %s77
      %s94 = sphi 0, %s78
      %s102 = sphi 0, %s104
      %s105 = sphi 0, %s102
      %s106 = sphi 0, %s105
      %s122 = sphi 0, %s106
      %s126 = sphi 0, %s126
      %s128 = sphi 0, %s126
      %s129 = sphi 0, %s128
      %s143 = sphi 0, %s129
      %s147 = sphi 0, %s147
      %s149 = sphi 0, %s147
      %s150 = sphi 0, %s149
      %s164 = sphi 0, %s150
      %s168 = sphi 0, %s168
      %s170 = sphi 0, %s168
      %s171 = sphi 0, %s170
      %s185 = sphi 0, %s171
      %s193 = sphi 0, %s195
      %s196 = sphi 0, %s193
      %s197 = sphi 0, %s196
      %s213 = sphi 0, %s197
    $region4: #{tpu_custom_call.1} parent=1 // loop_header_branch
      %25 = sbr.rel (%p23) target = $region8
    $region5: #{tpu_custom_call.1} parent=1 // loop_body
      %s27 = ssub.s32 %s22, 1
      %s28 = ssub.s32 %s22, 2
      %s35 = sadd.s32 1, %s30
      %p36 = scmp.ge.s32.totalorder %s35, 1
      %s37 = scalar_select %p36, 0, %s35
      %s38 = sadd.s32 1, %s29
      %s39 = scalar_select %p36, %s38, %s29
      %p40 = scmp.ge.s32.totalorder %s39, 2
      %s41 = scalar_select %p40, 0, %s39
      %s42 = ssub.s32 %s29, %s41
      %s43 = ssub.s32 %s30, %s37
      %s44 = sor.u32 %s42, %s43
      %p45 = scmp.eq.s32.totalorder %s44, 0
      %s47 = sadd.s32 %s46, 1
      %s48 = scalar_select %p45, %s46, %s47
      %p51 = pneg %p45
      %p52 = scmp.eq.s32.totalorder %s22, 1
      %p53 = por %p51, %p52
      %p54 = scmp.ne.s32.totalorder %s46, %s49
      %p55 = scmp.eq.s32.totalorder %s22, 0
      %p56 = por %p54, %p55
      %p57 = scmp.ne.s32.totalorder %s46, %s49
      %p58 = scmp.eq.s32.totalorder %s27, 1
      %p59 = por %p57, %p58
      %p60 = scmp.ne.s32.totalorder %s49, %s50
      %p61 = scmp.eq.s32.totalorder %s27, 0
      %p62 = por %p60, %p61
      %p63 = scmp.ne.s32.totalorder %s49, %s50
      %p64 = scmp.eq.s32.totalorder %s28, 1
      %p65 = por %p63, %p64
      %p67 = scmp.ne.s32.totalorder %s50, %s66
      %p68 = scmp.eq.s32.totalorder %s28, 0
      %p69 = por %p67, %p68
      %s70 = ssub.s32 %s29, %s41
      %s71 = ssub.s32 %s30, %s37
      %s72 = sor.u32 %s70, %s71
      %p73 = scmp.eq.s32.totalorder %s72, 0
      %s75 = sadd.s32 %s74, 1
      %s76 = scalar_select %p73, %s74, %s75
      %p79 = pneg %p73
      %p80 = scmp.eq.s32.totalorder %s22, 1
      %p81 = por %p79, %p80
      %p82 = scmp.ne.s32.totalorder %s74, %s77
      %p83 = scmp.eq.s32.totalorder %s22, 0
      %p84 = por %p82, %p83
      %p85 = scmp.ne.s32.totalorder %s74, %s77
      %p86 = scmp.eq.s32.totalorder %s27, 1
      %p87 = por %p85, %p86
      %p88 = scmp.ne.s32.totalorder %s77, %s78
      %p89 = scmp.eq.s32.totalorder %s27, 0
      %p90 = por %p88, %p89
      %p91 = scmp.ne.s32.totalorder %s77, %s78
      %p92 = scmp.eq.s32.totalorder %s28, 1
      %p93 = por %p91, %p92
      %p95 = scmp.ne.s32.totalorder %s78, %s94
      %p96 = scmp.eq.s32.totalorder %s28, 0
      %p97 = por %p95, %p96
      %s98 = ssub.s32 %s29, %s41
      %s99 = ssub.s32 %s30, %s37
      %s100 = sor.u32 %s98, %s99
      %p101 = scmp.eq.s32.totalorder %s100, 0
      %s103 = sadd.s32 %s102, 1
      %s104 = scalar_select %p101, %s102, %s103
      %p107 = pneg %p101
      %p108 = scmp.eq.s32.totalorder %s22, 1
      %p109 = por %p107, %p108
      %p110 = scmp.ne.s32.totalorder %s102, %s105
      %p111 = scmp.eq.s32.totalorder %s22, 0
      %p112 = por %p110, %p111
      %p113 = scmp.ne.s32.totalorder %s102, %s105
      %p114 = scmp.eq.s32.totalorder %s27, 1
      %p115 = por %p113, %p114
      %p116 = scmp.ne.s32.totalorder %s105, %s106
      %p117 = scmp.eq.s32.totalorder %s27, 0
      %p118 = por %p116, %p117
      %p119 = scmp.ne.s32.totalorder %s105, %s106
      %p120 = scmp.eq.s32.totalorder %s28, 1
      %p121 = por %p119, %p120
      %p123 = scmp.ne.s32.totalorder %s106, %s122
      %p124 = scmp.eq.s32.totalorder %s28, 0
      %p125 = por %p123, %p124
      %s127 = sadd.s32 %s126, 1
      %p130 = scmp.eq.s32.totalorder %s22, 1
      %p131 = scmp.ne.s32.totalorder %s126, %s128
      %p132 = scmp.eq.s32.totalorder %s22, 0
      %p133 = por %p131, %p132
      %p134 = scmp.ne.s32.totalorder %s126, %s128
      %p135 = scmp.eq.s32.totalorder %s27, 1
      %p136 = por %p134, %p135
      %p137 = scmp.ne.s32.totalorder %s128, %s129
      %p138 = scmp.eq.s32.totalorder %s27, 0
      %p139 = por %p137, %p138
      %p140 = scmp.ne.s32.totalorder %s128, %s129
      %p141 = scmp.eq.s32.totalorder %s28, 1
      %p142 = por %p140, %p141
      %p144 = scmp.ne.s32.totalorder %s129, %s143
      %p145 = scmp.eq.s32.totalorder %s28, 0
      %p146 = por %p144, %p145
      %s148 = sadd.s32 %s147, 1
      %p151 = scmp.eq.s32.totalorder %s22, 1
      %p152 = scmp.ne.s32.totalorder %s147, %s149
      %p153 = scmp.eq.s32.totalorder %s22, 0
      %p154 = por %p152, %p153
      %p155 = scmp.ne.s32.totalorder %s147, %s149
      %p156 = scmp.eq.s32.totalorder %s27, 1
      %p157 = por %p155, %p156
      %p158 = scmp.ne.s32.totalorder %s149, %s150
      %p159 = scmp.eq.s32.totalorder %s27, 0
      %p160 = por %p158, %p159
      %p161 = scmp.ne.s32.totalorder %s149, %s150
      %p162 = scmp.eq.s32.totalorder %s28, 1
      %p163 = por %p161, %p162
      %p165 = scmp.ne.s32.totalorder %s150, %s164
      %p166 = scmp.eq.s32.totalorder %s28, 0
      %p167 = por %p165, %p166
      %s169 = sadd.s32 %s168, 1
      %p172 = scmp.eq.s32.totalorder %s22, 1
      %p173 = scmp.ne.s32.totalorder %s168, %s170
      %p174 = scmp.eq.s32.totalorder %s22, 0
      %p175 = por %p173, %p174
      %p176 = scmp.ne.s32.totalorder %s168, %s170
      %p177 = scmp.eq.s32.totalorder %s27, 1
      %p178 = por %p176, %p177
      %p179 = scmp.ne.s32.totalorder %s170, %s171
      %p180 = scmp.eq.s32.totalorder %s27, 0
      %p181 = por %p179, %p180
      %p182 = scmp.ne.s32.totalorder %s170, %s171
      %p183 = scmp.eq.s32.totalorder %s28, 1
      %p184 = por %p182, %p183
      %p186 = scmp.ne.s32.totalorder %s171, %s185
      %p187 = scmp.eq.s32.totalorder %s28, 0
      %p188 = por %p186, %p187
      %s189 = ssub.s32 %s29, %s41
      %s190 = ssub.s32 %s30, %s37
      %s191 = sor.u32 %s189, %s190
      %p192 = scmp.eq.s32.totalorder %s191, 0
      %s194 = sadd.s32 %s193, 1
      %s195 = scalar_select %p192, %s193, %s194
      %p198 = pneg %p192
      %p199 = scmp.eq.s32.totalorder %s22, 1
      %p200 = por %p198, %p199
      %p201 = scmp.ne.s32.totalorder %s193, %s196
      %p202 = scmp.eq.s32.totalorder %s22, 0
      %p203 = por %p201, %p202
      %p204 = scmp.ne.s32.totalorder %s193, %s196
      %p205 = scmp.eq.s32.totalorder %s27, 1
      %p206 = por %p204, %p205
      %p207 = scmp.ne.s32.totalorder %s196, %s197
      %p208 = scmp.eq.s32.totalorder %s27, 0
      %p209 = por %p207, %p208
      %p210 = scmp.ne.s32.totalorder %s196, %s197
      %p211 = scmp.eq.s32.totalorder %s28, 1
      %p212 = por %p210, %p211
      %p214 = scmp.ne.s32.totalorder %s197, %s213
      %p215 = scmp.eq.s32.totalorder %s28, 0
      %p216 = por %p214, %p215
      %p217 = scmp.le.s32.totalorder 1, %s22
      %p218 = scmp.lt.s32.totalorder %s22, 3
      %p219 = pnand %p217, %p218
      %p220 = pneg %p219
      // Predicated region
      $region9: #{tpu_custom_call.1} parent=5 // pred_check
        _
      $region10: #{tpu_custom_call.1} parent=5 // pred_check_branch
        %222 = sbr.rel (%p219) target = $region12
      $region11: #{tpu_custom_call.1} parent=5 // pred_region
        %s223 = ssub.s32 %s22, 1
        // Predicated region
        $region13: #{tpu_custom_call.1} parent=11 // pred_check
          %p224 = pneg %p139
        $region14: #{tpu_custom_call.1} parent=11 // pred_check_branch
          %226 = sbr.rel (%p224) target = $region16
        $region15: #{tpu_custom_call.1} parent=11 // pred_region
          %s228 = ssub.s32 512, 512
          %229 = vsyncadd [#allocation9], %s228
          %s230 = sshll.u32 [#allocation8], 4
          %s231 = int_to_ptr.vmem [resolvable:$true] %s230
          %236 = dma.hbm_to_vmem [thread:$0]  %s3, 512, %s231, [#allocation9], 128, 128, 8
        $region16: #{tpu_custom_call.1} parent=11 // pred_fallthru
          _
        // Predicated region
        $region17: #{tpu_custom_call.1} parent=11 // pred_check
          %p237 = pneg %p160
        $region18: #{tpu_custom_call.1} parent=11 // pred_check_branch
          %239 = sbr.rel (%p237) target = $region20
        $region19: #{tpu_custom_call.1} parent=11 // pred_region
          %s241 = ssub.s32 512, 512
          %242 = vsyncadd [#allocation9], %s241
          %s243 = sshll.u32 [#allocation10], 4
          %s244 = int_to_ptr.vmem [resolvable:$true] %s243
          %249 = dma.hbm_to_vmem [thread:$0]  %s4, 512, %s244, [#allocation9], 128, 128, 8
        $region20: #{tpu_custom_call.1} parent=11 // pred_fallthru
          _
        // Predicated region
        $region21: #{tpu_custom_call.1} parent=11 // pred_check
          %p250 = pneg %p181
        $region22: #{tpu_custom_call.1} parent=11 // pred_check_branch
          %252 = sbr.rel (%p250) target = $region24
        $region23: #{tpu_custom_call.1} parent=11 // pred_region
          _
        $region24: #{tpu_custom_call.1} parent=11 // pred_fallthru
          _
      $region12: #{tpu_custom_call.1} parent=5 // pred_fallthru
        _
      %p253 = scmp.lt.s32.totalorder %s22, 2
      // Predicated region
      $region25: #{tpu_custom_call.1} parent=5 // pred_check
        %p254 = pneg %p253
      $region26: #{tpu_custom_call.1} parent=5 // pred_check_branch
        %256 = sbr.rel (%p254) target = $region28
      $region27: #{tpu_custom_call.1} parent=5 // pred_region
        // Predicated region
        $region29: #{tpu_custom_call.1} parent=27 // pred_check
          %p257 = pneg %p56
        $region30: #{tpu_custom_call.1} parent=27 // pred_check_branch
          %259 = sbr.rel (%p257) target = $region32
        $region31: #{tpu_custom_call.1} parent=27 // pred_region
          %s260 = sand.u32 %s46, 1
          %s261 = scalar_lea.sflag [#allocation3], %s260
          %s262 = sand.u32 %s46, 1
          %s263 = smul.addr %s262, 16
          %s264 = scalar_lea.vmem [#allocation2], %s263
          %s265 = smul.u32 2, %s30
          %s267 = ssub.s32 256, 256
          %268 = vsyncadd %s261, %s267
          %s269 = smul.addr %s29, 2
          %s270 = sadd.s32 %s265, %s269
          %s271 = smul.addr %s270, 128
          %s272 = scalar_lea.hbm %s0, %s271
          %s273 = sshll.u32 %s264, 4
          %s274 = int_to_ptr.vmem [resolvable:$true] %s273
          %279 = dma.hbm_to_vmem [thread:$0]  %s272, 256, %s274, %s261, 128, 128, 8
        $region32: #{tpu_custom_call.1} parent=27 // pred_fallthru
          _
        // Predicated region
        $region33: #{tpu_custom_call.1} parent=27 // pred_check
          %p280 = pneg %p84
        $region34: #{tpu_custom_call.1} parent=27 // pred_check_branch
          %282 = sbr.rel (%p280) target = $region36
        $region35: #{tpu_custom_call.1} parent=27 // pred_region
          %s283 = sand.u32 %s22, 1
          %s284 = scalar_lea.sflag [#allocation6], %s283
          %s285 = sand.u32 %s74, 1
          %s286 = smul.addr %s285, 16
          %s287 = scalar_lea.vmem [#allocation5], %s286
          %s288 = smul.u32 2, %s30
          %s290 = ssub.s32 256, 256
          %291 = vsyncadd %s284, %s290
          %s292 = smul.addr %s29, 2
          %s293 = sadd.s32 %s288, %s292
          %s294 = smul.addr %s293, 128
          %s295 = scalar_lea.hbm %s1, %s294
          %s296 = sshll.u32 %s287, 4
          %s297 = int_to_ptr.vmem [resolvable:$true] %s296
          %302 = dma.hbm_to_vmem [thread:$0]  %s295, 256, %s297, %s284, 128, 128, 8
        $region36: #{tpu_custom_call.1} parent=27 // pred_fallthru
          _
        // Predicated region
        $region37: #{tpu_custom_call.1} parent=27 // pred_check
          %p303 = pneg %p112
        $region38: #{tpu_custom_call.1} parent=27 // pred_check_branch
          %305 = sbr.rel (%p303) target = $region40
        $region39: #{tpu_custom_call.1} parent=27 // pred_region
          %s306 = sand.u32 %s22, 1
          %s307 = scalar_lea.sflag [#allocation6], %s306
          %s308 = sand.u32 %s102, 1
          %s309 = smul.addr %s308, 16
          %s310 = scalar_lea.vmem [#allocation7], %s309
          %s311 = smul.u32 2, %s30
          %s313 = ssub.s32 256, 256
          %314 = vsyncadd %s307, %s313
          %s315 = smul.addr %s29, 2
          %s316 = sadd.s32 %s311, %s315
          %s317 = smul.addr %s316, 128
          %s318 = scalar_lea.hbm %s2, %s317
          %s319 = sshll.u32 %s310, 4
          %s320 = int_to_ptr.vmem [resolvable:$true] %s319
          %325 = dma.hbm_to_vmem [thread:$0]  %s318, 256, %s320, %s307, 128, 128, 8
        $region40: #{tpu_custom_call.1} parent=27 // pred_fallthru
          _
      $region28: #{tpu_custom_call.1} parent=5 // pred_fallthru
        _
      %p326 = scmp.le.s32.totalorder 1, %s22
      %p327 = scmp.lt.s32.totalorder %s22, 3
      %p328 = pnand %p326, %p327
      %p329 = pneg %p328
      // Predicated region
      $region41: #{tpu_custom_call.1} parent=5 // pred_check
        _
      $region42: #{tpu_custom_call.1} parent=5 // pred_check_branch
        %331 = sbr.rel (%p328) target = $region44
      $region43: #{tpu_custom_call.1} parent=5 // pred_region
        %s332 = ssub.s32 %s22, 1
        %s333 = sand.u32 %s49, 1
        %s334 = scalar_lea.sflag [#allocation3], %s333
        %s335 = sand.u32 %s49, 1
        %s336 = smul.addr %s335, 16
        %s337 = scalar_lea.vmem [#allocation2], %s336
        // Predicated region
        $region45: #{tpu_custom_call.1} parent=43 // pred_check
          %p338 = pneg %p62
        $region46: #{tpu_custom_call.1} parent=43 // pred_check_branch
          %340 = sbr.rel (%p338) target = $region48
        $region47: #{tpu_custom_call.1} parent=43 // pred_region
          %341 = dma.done %s334, 256
        $region48: #{tpu_custom_call.1} parent=43 // pred_fallthru
          _
        %s342 = sand.u32 %s27, 1
        %s343 = scalar_lea.sflag [#allocation6], %s342
        %s344 = sand.u32 %s77, 1
        %s345 = smul.addr %s344, 16
        %s346 = scalar_lea.vmem [#allocation5], %s345
        // Predicated region
        $region49: #{tpu_custom_call.1} parent=43 // pred_check
          %p347 = pneg %p90
        $region50: #{tpu_custom_call.1} parent=43 // pred_check_branch
          %349 = sbr.rel (%p347) target = $region52
        $region51: #{tpu_custom_call.1} parent=43 // pred_region
          %350 = dma.done %s343, 256
        $region52: #{tpu_custom_call.1} parent=43 // pred_fallthru
          _
        %s351 = sand.u32 %s27, 1
        %s352 = scalar_lea.sflag [#allocation6], %s351
        %s353 = sand.u32 %s105, 1
        %s354 = smul.addr %s353, 16
        %s355 = scalar_lea.vmem [#allocation7], %s354
        // Predicated region
        $region53: #{tpu_custom_call.1} parent=43 // pred_check
          %p356 = pneg %p118
        $region54: #{tpu_custom_call.1} parent=43 // pred_check_branch
          %358 = sbr.rel (%p356) target = $region56
        $region55: #{tpu_custom_call.1} parent=43 // pred_region
          %359 = dma.done %s352, 256
        $region56: #{tpu_custom_call.1} parent=43 // pred_fallthru
          _
        // Predicated region
        $region57: #{tpu_custom_call.1} parent=43 // pred_check
          %p360 = pneg %p139
        $region58: #{tpu_custom_call.1} parent=43 // pred_check_branch
          %362 = sbr.rel (%p360) target = $region60
        $region59: #{tpu_custom_call.1} parent=43 // pred_region
          %363 = dma.done [#allocation9], 512
        $region60: #{tpu_custom_call.1} parent=43 // pred_fallthru
          _
        // Predicated region
        $region61: #{tpu_custom_call.1} parent=43 // pred_check
          %p364 = pneg %p160
        $region62: #{tpu_custom_call.1} parent=43 // pred_check_branch
          %366 = sbr.rel (%p364) target = $region64
        $region63: #{tpu_custom_call.1} parent=43 // pred_region
          %367 = dma.done [#allocation9], 512
        $region64: #{tpu_custom_call.1} parent=43 // pred_fallthru
          _
        %s368 = sand.u32 %s49, 1
        %s369 = scalar_lea.sflag [#allocation3], %s368
        %s370 = sand.u32 %s49, 1
        %s371 = smul.addr %s370, 16
        %s372 = scalar_lea.vmem [#allocation2], %s371
        %p373 = pneg %p62
        %p374 = pneg %p59
        %s375 = sand.u32 %s27, 1
        %s376 = scalar_lea.sflag [#allocation6], %s375
        %s377 = sand.u32 %s77, 1
        %s378 = smul.addr %s377, 16
        %s379 = scalar_lea.vmem [#allocation5], %s378
        %p380 = pneg %p90
        %p381 = pneg %p87
        %s382 = sand.u32 %s27, 1
        %s383 = scalar_lea.sflag [#allocation6], %s382
        %s384 = sand.u32 %s105, 1
        %s385 = smul.addr %s384, 16
        %s386 = scalar_lea.vmem [#allocation7], %s385
        %p387 = pneg %p118
        %p388 = pneg %p115
        %p389 = pneg %p139
        %p390 = pneg %p136
        %p391 = pneg %p160
        %p392 = pneg %p157
        %p393 = pneg %p181
        %p394 = pneg %p178
        %p395 = pneg %p209
        %p396 = pneg %p206
        %s397 = sand.u32 %s196, 1
        %s398 = scalar_lea.sflag [#allocation4], %s397
        %s399 = sand.u32 %s196, 1
        %s400 = smul.addr %s399, 16
        %s401 = scalar_lea.vmem [#allocation11], %s400
        %s402 = smul.u32 2, %s32
        %s403 = smul.u32 2, %s32
        %s404 = smul.u32 2, %s32
        %s405 = smul.u32 2, %s32
        %v406 = vld [vmem:[%s337] sm:$0xff]
        %v407 = vld [vmem:[%s337 + $0x8] sm:$0xff]
        %v408 = vld [vmem:[%s346] sm:$0xff]
        %v409 = vld [vmem:[%s346 + $0x8] sm:$0xff]
        %v410 = vld [vmem:[%s355] sm:$0xff]
        %v411 = vld [vmem:[%s355 + $0x8] sm:$0xff]
        %v412 = vld [vmem:[%s5] sm:$0xf]
        %v413 = vand.u32 2147483647, %v406
        %v414 = vand.u32 2147483647, %v407
        %vm415 = vcmask 261120
        %v416 = vsel %vm415, %v413, 0.0
        %417 = vadd.xlane.f32.xlu0 %v416
        %v418 = vpop.xlane.xlu0 %417
        %v419 = vsel %vm415, %v414, 0.0
        %420 = vadd.xlane.f32.xlu0 %v419
        %v421 = vpop.xlane.xlu0 %420
        %vm422 = vcmp.ne.f32.partialorder %v418, 0.0
        %vm423 = vcmp.ne.f32.partialorder %v421, 0.0
        %v424 = vsel %vm422, 1, 0
        %v425 = vsel %vm423, 1, 0
        %v426 = vcvt.s32.f32 %v424
        %v427 = vcvt.s32.f32 %v425
        %v428 = vadd.f32 %v406, %v408
        %v429 = vadd.f32 %v407, %v409
        %v430 = vmul.f32 %v428, %v426
        %v431 = vmul.f32 %v429, %v427
        %v432 = vsel %vm415, %v430, 0.0
        %433 = vadd.xlane.f32.xlu0 %v432
        %v434 = vpop.xlane.xlu0 %433
        %v435 = vsel %vm415, %v431, 0.0
        %436 = vadd.xlane.f32.xlu0 %v435
        %v437 = vpop.xlane.xlu0 %436
        %v438 = vrcp.pop 32.0
        %v439 = vmul.f32 %v434, %v438
        %v440 = vmul.f32 %v437, %v438
        %v441 = vsub.f32 %v430, %v439
        %v442 = vsub.f32 %v431, %v440
        %v443 = vmul.f32 %v441, %v441
        %v444 = vmul.f32 %v442, %v442
        %v445 = vsel %vm415, %v443, 0.0
        %446 = vadd.xlane.f32.xlu0 %v445
        %v447 = vpop.xlane.xlu0 %446
        %v448 = vsel %vm415, %v444, 0.0
        %449 = vadd.xlane.f32.xlu0 %v448
        %v450 = vpop.xlane.xlu0 %449
        %v451 = vmul.f32 %v447, %v438
        %v452 = vmul.f32 %v450, %v438
        %v453 = vadd.f32 %v451, 1e-05
        %v454 = vadd.f32 %v452, 1e-05
        %v455 = vrsqrt.pop %v453
        %v456 = vrsqrt.pop %v454
        %v457 = vmul.f32 %v441, %v455
        %v458 = vmul.f32 %v442, %v456
        %v459 = vlaneseq
        %v460 = vshrl.u32 %v459, 7
        %v461 = vsub.s32 0, %v460
        %v462 = vrot.slane %v412, %v461
        %v463 = vmul.f32 %v457, %v462
        %v464 = vmul.f32 %v458, %v462
        %v465 = vlaneseq
        %v466 = vshrl.u32 %v465, 7
        %v467 = vsub.s32 1, %v466
        %v468 = vrot.slane %v412, %v467
        %v469 = vadd.f32 %v463, %v468
        %v470 = vadd.f32 %v464, %v468
        %v471 = vld [vmem:[#allocation8] sm:$0xff]
        %v472 = vld [vmem:[#allocation8 + $0x8] sm:$0xff]
        %v473 = vld [vmem:[#allocation8 + $0x10] sm:$0xff]
        %v474 = vld [vmem:[#allocation8 + $0x18] sm:$0xff]
        %v475 = vlaneseq
        %v476 = vshrl.u32 %v475, 7
        %v477 = vsub.s32 2, %v476
        %v478 = vrot.slane %v412, %v477
        %v480 = vsel %vm415, %v410, 0
        %v483 = vsel %vm415, %v411, 0
        %485 = vmatprep.subr.mxu0 0.0
        %486 = vmatpush1.msra.mxu0 %v471
        %487 = vmatprep.subr.mxu0 0.0
        %488 = vmatpush1.msra.mxu0 %v472
        %489 = vmatprep.subr.mxu0 0.0
        %490 = vmatpush1.msra.mxu0 %v473
        %491 = vmatprep.subr.mxu0 0.0
        %492 = vmatpush1.msra.mxu0 %v474
        %493 = vmatprep.subr.mxu0 0.0
        %494 = vmatpush1.msra.mxu0 0.0
        %495 = vmatprep.subr.mxu0 0.0
        %496 = vmatpush1.msra.mxu0 0.0
        %497 = vmatprep.subr.mxu0 0.0
        %498 = vmatpush1.msra.mxu0 0.0
        %499 = vmatprep.subr.mxu0 0.0
        %500 = vmatpush1.msra.mxu0 0.0
        %501 = vmatprep.subr.mxu0 0.0
        %502 = vmatpush1.msra.mxu0 0.0
        %503 = vmatprep.subr.mxu0 0.0
        %504 = vmatpush1.msra.mxu0 0.0
        %505 = vmatprep.subr.mxu0 0.0
        %506 = vmatpush1.msra.mxu0 0.0
        %507 = vmatprep.subr.mxu0 0.0
        %508 = vmatpush1.msra.mxu0 0.0
        %509 = vmatprep.subr.mxu0 0.0
        %510 = vmatpush1.msra.mxu0 0.0
        %511 = vmatprep.subr.mxu0 0.0
        %512 = vmatpush1.msra.mxu0 0.0
        %513 = vmatprep.subr.mxu0 0.0
        %514 = vmatpush1.msra.mxu0 0.0
        %515 = vmatprep.subr.mxu0 0.0
        %516 = vmatpush1.msra.mxu0 0.0
        %517 = vmatprep.subr.mxu0 0.0
        %518 = vmatpush1.msra.mxu0 0.0
        %519 = vmatprep.subr.mxu0 0.0
        %520 = vmatpush1.msra.mxu0 0.0
        %521 = vmatprep.subr.mxu0 0.0
        %522 = vmatpush1.msra.mxu0 0.0
        %523 = vmatprep.subr.mxu0 0.0
        %524 = vmatpush1.msra.mxu0 0.0
        %525 = vmatprep.subr.mxu0 0.0
        %526 = vmatpush1.msra.mxu0 0.0
        %527 = vmatprep.subr.mxu0 0.0
        %528 = vmatpush1.msra.mxu0 0.0
        %529 = vmatprep.subr.mxu0 0.0
        %530 = vmatpush1.msra.mxu0 0.0
        %531 = vmatprep.subr.mxu0 0.0
        %532 = vmatpush1.msra.mxu0 0.0
        %533 = vmatprep.subr.mxu0 0.0
        %534 = vmatpush1.msra.mxu0 0.0
        %535 = vmatprep.subr.mxu0 0.0
        %536 = vmatpush1.msra.mxu0 0.0
        %537 = vmatprep.subr.mxu0 0.0
        %538 = vmatpush1.msra.mxu0 0.0
        %539 = vmatprep.subr.mxu0 0.0
        %540 = vmatpush1.msra.mxu0 0.0
        %541 = vmatprep.subr.mxu0 0.0
        %542 = vmatpush1.msra.mxu0 0.0
        %543 = vmatprep.subr.mxu0 0.0
        %544 = vmatpush1.msra.mxu0 0.0
        %545 = vmatprep.subr.mxu0 0.0
        %546 = vmatpush1.msra.mxu0 0.0
        %547 = vmatprep.subr.mxu0 0.0
        %548 = vmatpush1.msra.mxu0 0.0
        %549 = vmatprep.mubr.f32.mxu0 0.0
        %550 = vmatmul.mubr.f32.gmra.mrb[0].mxu0 %v480
        %v551 = vpop.f32.mrb[0].mxu0
        %v552 = vadd.f32 %v478, %v551
        %v553 = vpop.f32.mrb[0].mxu0
        %554 = vmatprep.mubr.f32.mxu0 0.0
        %555 = vmatmul.mubr.f32.gmra.mrb[0].mxu0 %v483
        %v556 = vpop.f32.mrb[0].mxu0
        %v557 = vadd.f32 %v478, %v556
        %v558 = vpop.f32.mrb[0].mxu0
        %559 = vdwg.mxu0
        %v560 = vld [vmem:[#allocation10] sm:$0xff]
        %v561 = vld [vmem:[#allocation10 + $0x8] sm:$0xff]
        %v562 = vld [vmem:[#allocation10 + $0x10] sm:$0xff]
        %v563 = vld [vmem:[#allocation10 + $0x18] sm:$0xff]
        %v564 = vlaneseq
        %v565 = vshrl.u32 %v564, 7
        %v566 = vsub.s32 3, %v565
        %v567 = vrot.slane %v412, %v566
        %568 = vmatprep.subr.mxu0 0.0
        %569 = vmatpush1.msra.mxu0 %v560
        %570 = vmatprep.subr.mxu0 0.0
        %571 = vmatpush1.msra.mxu0 %v561
        %572 = vmatprep.subr.mxu0 0.0
        %573 = vmatpush1.msra.mxu0 %v562
        %574 = vmatprep.subr.mxu0 0.0
        %575 = vmatpush1.msra.mxu0 %v563
        %576 = vmatprep.subr.mxu0 0.0
        %577 = vmatpush1.msra.mxu0 0.0
        %578 = vmatprep.subr.mxu0 0.0
        %579 = vmatpush1.msra.mxu0 0.0
        %580 = vmatprep.subr.mxu0 0.0
        %581 = vmatpush1.msra.mxu0 0.0
        %582 = vmatprep.subr.mxu0 0.0
        %583 = vmatpush1.msra.mxu0 0.0
        %584 = vmatprep.subr.mxu0 0.0
        %585 = vmatpush1.msra.mxu0 0.0
        %586 = vmatprep.subr.mxu0 0.0
        %587 = vmatpush1.msra.mxu0 0.0
        %588 = vmatprep.subr.mxu0 0.0
        %589 = vmatpush1.msra.mxu0 0.0
        %590 = vmatprep.subr.mxu0 0.0
        %591 = vmatpush1.msra.mxu0 0.0
        %592 = vmatprep.subr.mxu0 0.0
        %593 = vmatpush1.msra.mxu0 0.0
        %594 = vmatprep.subr.mxu0 0.0
        %595 = vmatpush1.msra.mxu0 0.0
        %596 = vmatprep.subr.mxu0 0.0
        %597 = vmatpush1.msra.mxu0 0.0
        %598 = vmatprep.subr.mxu0 0.0
        %599 = vmatpush1.msra.mxu0 0.0
        %600 = vmatprep.subr.mxu0 0.0
        %601 = vmatpush1.msra.mxu0 0.0
        %602 = vmatprep.subr.mxu0 0.0
        %603 = vmatpush1.msra.mxu0 0.0
        %604 = vmatprep.subr.mxu0 0.0
        %605 = vmatpush1.msra.mxu0 0.0
        %606 = vmatprep.subr.mxu0 0.0
        %607 = vmatpush1.msra.mxu0 0.0
        %608 = vmatprep.subr.mxu0 0.0
        %609 = vmatpush1.msra.mxu0 0.0
        %610 = vmatprep.subr.mxu0 0.0
        %611 = vmatpush1.msra.mxu0 0.0
        %612 = vmatprep.subr.mxu0 0.0
        %613 = vmatpush1.msra.mxu0 0.0
        %614 = vmatprep.subr.mxu0 0.0
        %615 = vmatpush1.msra.mxu0 0.0
        %616 = vmatprep.subr.mxu0 0.0
        %617 = vmatpush1.msra.mxu0 0.0
        %618 = vmatprep.subr.mxu0 0.0
        %619 = vmatpush1.msra.mxu0 0.0
        %620 = vmatprep.subr.mxu0 0.0
        %621 = vmatpush1.msra.mxu0 0.0
        %622 = vmatprep.subr.mxu0 0.0
        %623 = vmatpush1.msra.mxu0 0.0
        %624 = vmatprep.subr.mxu0 0.0
        %625 = vmatpush1.msra.mxu0 0.0
        %626 = vmatprep.subr.mxu0 0.0
        %627 = vmatpush1.msra.mxu0 0.0
        %628 = vmatprep.subr.mxu0 0.0
        %629 = vmatpush1.msra.mxu0 0.0
        %630 = vmatprep.subr.mxu0 0.0
        %631 = vmatpush1.msra.mxu0 0.0
        %632 = vmatprep.mubr.f32.mxu0 0.0
        %633 = vmatmul.mubr.f32.gmra.mrb[0].mxu0 %v480
        %v634 = vpop.f32.mrb[0].mxu0
        %v635 = vadd.f32 %v567, %v634
        %v636 = vpop.f32.mrb[0].mxu0
        %637 = vmatprep.mubr.f32.mxu0 0.0
        %638 = vmatmul.mubr.f32.gmra.mrb[0].mxu0 %v483
        %v639 = vpop.f32.mrb[0].mxu0
        %v640 = vadd.f32 %v567, %v639
        %v641 = vpop.f32.mrb[0].mxu0
        %642 = vdwg.mxu0
        %v643 = vmul.f32 %v469, %v552
        %v644 = vmul.f32 %v470, %v557
        %v645 = vadd.f32 %v643, %v635
        %v646 = vadd.f32 %v644, %v640
        %v647 = vmul.f32 %v645, %v426
        %v648 = vmul.f32 %v646, %v427
        %649 = vst.msk [vmem:[%s401] sm:$0xff] %vm415, %v647
        %650 = vst.msk [vmem:[%s401 + $0x8] sm:$0xff] %vm415, %v648
        %s651 = sand.u32 %s196, 1
        %s652 = scalar_lea.sflag [#allocation4], %s651
        %s653 = sand.u32 %s196, 1
        %s654 = smul.addr %s653, 16
        %s655 = scalar_lea.vmem [#allocation11], %s654
        // Predicated region
        $region65: #{tpu_custom_call.1} parent=43 // pred_check
          %p656 = pneg %p206
        $region66: #{tpu_custom_call.1} parent=43 // pred_check_branch
          %658 = sbr.rel (%p656) target = $region68
        $region67: #{tpu_custom_call.1} parent=43 // pred_region
          %s659 = smul.u32 2, %s32
          %s661 = ssub.s32 256, 256
          %662 = vsyncadd %s652, %s661
          %s663 = smul.addr %s31, 2
          %s664 = sadd.s32 %s659, %s663
          %s665 = smul.addr %s664, 128
          %s666 = scalar_lea.hbm %s6, %s665
          %s667 = sshll.u32 %s655, 4
          %s668 = int_to_ptr.vmem [resolvable:$true] %s667
          %673 = dma.vmem_to_hbm [thread:$0]  %s668, 256, %s666, %s652, 128, 128, 8
        $region68: #{tpu_custom_call.1} parent=43 // pred_fallthru
          _
      $region44: #{tpu_custom_call.1} parent=5 // pred_fallthru
        _
      %p674 = scmp.le.s32.totalorder 2, %s22
      // Predicated region
      $region69: #{tpu_custom_call.1} parent=5 // pred_check
        %p675 = pneg %p674
      $region70: #{tpu_custom_call.1} parent=5 // pred_check_branch
        %677 = sbr.rel (%p675) target = $region72
      $region71: #{tpu_custom_call.1} parent=5 // pred_region
        %s678 = ssub.s32 %s22, 2
        // Predicated region
        $region73: #{tpu_custom_call.1} parent=71 // pred_check
          %p679 = pneg %p212
        $region74: #{tpu_custom_call.1} parent=71 // pred_check_branch
          %681 = sbr.rel (%p679) target = $region76
        $region75: #{tpu_custom_call.1} parent=71 // pred_region
          %s682 = sand.u32 %s197, 1
          %s683 = scalar_lea.sflag [#allocation4], %s682
          %s684 = sand.u32 %s197, 1
          %s685 = smul.addr %s684, 16
          %s686 = scalar_lea.vmem [#allocation11], %s685
          %687 = dma.done %s683, 256
        $region76: #{tpu_custom_call.1} parent=71 // pred_fallthru
          _
      $region72: #{tpu_custom_call.1} parent=5 // pred_fallthru
        _
    $region6: #{tpu_custom_call.1} parent=1 // loop_footer
      %s26 = sadd.s32 1, %s22
    $region7: #{tpu_custom_call.1} parent=1 // loop_footer_branch
      %21 = sbr.rel target = $region3
    $region8: #{tpu_custom_call.1} parent=1 // loop_exit
      _
    %688 = vsyncpa [#allocation3], 1
    %s689 = scalar_lea.sflag [#allocation3], 1
    %690 = vsyncpa %s689, 1
    %691 = vsyncpa [#allocation6], 1
    %s692 = scalar_lea.sflag [#allocation6], 1
    %693 = vsyncpa %s692, 1
    %694 = vsyncpa [#allocation9], 1
    %695 = vsyncpa [#allocation4], 1
    %s696 = scalar_lea.sflag [#allocation4], 1
    %697 = vsyncpa %s696, 1

</llo_original>
